<compile_context>
chip_gen: v7x
topology: tpu7x:2x2x1
jax: 0.10.0
libtpu: 0.0.40
codegen_flags: <defaults>
</compile_context>

<pallas_src>
import functools

import jax
import jax.numpy as jnp
from jax.experimental import pallas as pl
from jax.experimental.pallas import tpu as pltpu


def _channel_attention_kernel(x_ref, w1t_ref, w2t_ref, o_ref,
                              acc_sum, acc_max,
                              *, hw, tile_hw, needs_mask):
    # x_ref:   (1, C, TILE_HW)   streamed tile of the input
    # w1t_ref: (C, Cr)           first 1x1 conv weight, transposed
    # w2t_ref: (Cr, C)           second 1x1 conv weight, transposed
    # o_ref:   (1, 1, C)         per-batch attention weights
    # acc_sum/acc_max: (1, C, TILE_HW) f32 lane-wide running accumulators
    s = pl.program_id(1)

    x = x_ref[...].astype(jnp.float32)                      # (1, C, TILE_HW)

    if needs_mask:
        # Mask the padded lanes of the last (partial) tile: 0 for the sum,
        # -inf for the max, so padding can never corrupt the statistics.
        lane = jax.lax.broadcasted_iota(jnp.int32, x.shape, dimension=2)
        valid = (s * tile_hw + lane) < hw
        x_sum = jnp.where(valid, x, 0.0)
        x_max = jnp.where(valid, x, -jnp.inf)
    else:
        x_sum = x
        x_max = x

    # --- running element-wise accumulation (VPU only; no per-tile XLU) -----
    @pl.when(s == 0)
    def _():
        acc_sum[...] = x_sum
        acc_max[...] = x_max

    @pl.when(s > 0)
    def _():
        acc_sum[...] = acc_sum[...] + x_sum
        acc_max[...] = jnp.maximum(acc_max[...], x_max)

    # --- one-shot finalize: reduce, fc, sigmoid, store ----------------------
    @pl.when(s == pl.num_programs(1) - 1)
    def _():
        avg = jnp.sum(acc_sum[...], axis=-1) * (1.0 / hw)    # (1, C)
        mx = jnp.max(acc_max[...], axis=-1)                  # (1, C)

        w1t = w1t_ref[...].astype(jnp.float32)               # (C, Cr)
        w2t = w2t_ref[...].astype(jnp.float32)               # (Cr, C)

        def fc(v):                                           # v: (1, C)
            h = jnp.maximum(
                jnp.dot(v, w1t, preferred_element_type=jnp.float32), 0.0)
            return jnp.dot(h, w2t, preferred_element_type=jnp.float32)

        z = fc(avg) + fc(mx)                                 # (1, C)

        # Numerically stable sigmoid built from primitives known to lower.
        pos = z >= 0.0
        ez = jnp.exp(jnp.where(pos, -z, z))                  # exp of <= 0
        sig = jnp.where(pos, 1.0 / (1.0 + ez), ez / (1.0 + ez))

        o_ref[...] = sig[None].astype(o_ref.dtype)           # (1, 1, C)


def channel_attention(x, w1, w2, *, tile_hw=None, out_dtype=None):
    """x: (B, C, H, W); w1: (Cr, C); w2: (C, Cr).  Returns (B, C, 1, 1)."""
    B, C, H, W = x.shape
    Cr = w1.shape[0]
    HW = H * W

    # --- pick a lane tile along H*W -----------------------------------------
    # Big tiles amortize the ~0.35us grid-step overhead; keep
    # 2 (double buffer) x C x TILE_HW x 4B well under the scoped VMEM default
    # (16 MiB v5e / 32 MiB v6e,v7x).  TILE_HW=2048, C<=256 f32 -> <=2 MiB/buf.
    if tile_hw is None:
        tile_hw = 2048
    if HW <= tile_hw:
        tile_hw = HW                          # single full-extent tile (legal)
    else:
        tile_hw = max(128, (tile_hw // 128) * 128)   # lane-dim multiple of 128

    n_s = pl.cdiv(HW, tile_hw)
    needs_mask = (HW % tile_hw) != 0

    x3 = x.reshape(B, C, HW)
    w1t = jnp.transpose(w1)                   # (C, Cr)
    w2t = jnp.transpose(w2)                   # (Cr, C)
    out_dtype = out_dtype or x.dtype

    kernel = functools.partial(
        _channel_attention_kernel,
        hw=HW, tile_hw=tile_hw, needs_mask=needs_mask)

    out = pl.pallas_call(
        kernel,
        out_shape=jax.ShapeDtypeStruct((B, 1, C), out_dtype),
        grid_spec=pltpu.PrefetchScalarGridSpec(
            num_scalar_prefetch=0,
            grid=(B, n_s),
            in_specs=[
                # streamed input tiles
                pl.BlockSpec((1, C, tile_hw), lambda b, s: (b, 0, s)),
                # tiny weights: constant index_map -> fetched once, VMEM-resident
                pl.BlockSpec((C, Cr), lambda b, s: (0, 0)),
                pl.BlockSpec((Cr, C), lambda b, s: (0, 0)),
            ],
            out_specs=pl.BlockSpec((1, 1, C), lambda b, s: (b, 0, 0)),
            scratch_shapes=[
                pltpu.VMEM((1, C, tile_hw), jnp.float32),   # running sum
                pltpu.VMEM((1, C, tile_hw), jnp.float32),   # running max
            ],
        ),
        compiler_params=pltpu.CompilerParams(
            # batch axis can shard across TensorCores; HW reduction is sequential
            dimension_semantics=("parallel", "arbitrary"),
        ),
    )(x3, w1t, w2t)

    return out.reshape(B, C, 1, 1)


def channel_attention_ref(x, w1, w2):
    """Pure-JAX reference mirroring the PyTorch module."""
    avg = jnp.mean(x, axis=(2, 3))                       # (B, C)
    mx = jnp.max(x, axis=(2, 3))                         # (B, C)

    def fc(v):
        h = jnp.maximum(v @ w1.T, 0.0)                   # (B, Cr)
        return h @ w2.T                                  # (B, C)

    return jax.nn.sigmoid(fc(avg) + fc(mx))[:, :, None, None]


if __name__ == "__main__":
    # Small but representative: C=64 so reduction_ratio=16 gives Cr=4;
    # H=W=20 so HW=400 exercises multi-tile accumulation AND the masked
    # partial tail tile (400 = 3*128 + 16) with tile_hw=128.
    B, C, H, W = 2, 64, 20, 20
    reduction_ratio = 16
    Cr = C // reduction_ratio                            # 4

    key = jax.random.PRNGKey(0)
    kx, k1, k2 = jax.random.split(key, 3)

    x = jax.random.normal(kx, (B, C, H, W), dtype=jnp.float32)
    # Conv2d(C, Cr, 1, bias=False).weight -> (Cr, C, 1, 1) squeezed to (Cr, C)
    w1 = jax.random.normal(k1, (Cr, C), dtype=jnp.float32) * 0.1
    # Conv2d(Cr, C, 1, bias=False).weight -> (C, Cr, 1, 1) squeezed to (C, Cr)
    w2 = jax.random.normal(k2, (C, Cr), dtype=jnp.float32) * 0.1

    out = channel_attention(x, w1, w2, tile_hw=128)
    out = jax.block_until_ready(out)

    ref = channel_attention_ref(x, w1, w2)
    assert out.shape == (B, C, 1, 1)
    assert jnp.allclose(out, ref, atol=1e-5, rtol=1e-5), "mismatch vs reference"

    print("KERNEL_OK")
</pallas_src>

<mosaic_0001>
module attributes {stable_mosaic.version = 11 : i64} {
  func.func @_channel_attention_kernel(%arg0: i32, %arg1: i32, %arg2: memref<1x64x128xf32, #tpu.memory_space<vmem>>, %arg3: memref<64x4xf32, #tpu.memory_space<vmem>>, %arg4: memref<4x64xf32, #tpu.memory_space<vmem>>, %arg5: memref<1x1x64xf32, #tpu.memory_space<vmem>>, %arg6: memref<1x64x128xf32, #tpu.memory_space<vmem>>, %arg7: memref<1x64x128xf32, #tpu.memory_space<vmem>>) attributes {dimension_semantics = [#tpu.dimension_semantics<parallel>, #tpu.dimension_semantics<arbitrary>], iteration_bounds = array<i64: 2, 4>, scalar_prefetch = 0 : i64, scratch_operands = 2 : i64, tpu.core_type = #tpu.core_type<tc>, window_params = [{transform_indices = @transform_0, window_bounds = array<i64: 1, 64, 128>}, {pipeline_mode = #tpu.pipeline_mode<synchronous>, transform_indices = @transform_1, window_bounds = array<i64: 64, 4>}, {pipeline_mode = #tpu.pipeline_mode<synchronous>, transform_indices = @transform_2, window_bounds = array<i64: 4, 64>}, {transform_indices = @transform_3, window_bounds = array<i64: 1, 1, 64>}]} {
    %c0 = arith.constant 0 : index
    %c0_0 = arith.constant 0 : index
    %c0_1 = arith.constant 0 : index
    %0 = vector.load %arg2[%c0, %c0_0, %c0_1] : memref<1x64x128xf32, #tpu.memory_space<vmem>>, vector<1x64x128xf32>
    %1 = tpu.iota {dimensions = array<i32: 2>} : vector<1x64x128xi32>
    %c128_i32 = arith.constant 128 : i32
    %2 = arith.muli %arg1, %c128_i32 : i32
    %3 = vector.broadcast %2 : i32 to vector<1x64x128xi32>
    %4 = arith.addi %3, %1 : vector<1x64x128xi32>
    %c400_i32 = arith.constant 400 : i32
    %5 = vector.broadcast %c400_i32 : i32 to vector<1x64x128xi32>
    %6 = arith.cmpi slt, %4, %5 : vector<1x64x128xi32>
    %cst = arith.constant 0.000000e+00 : f32
    %7 = vector.broadcast %cst : f32 to vector<1x64x128xf32>
    %8 = arith.select %6, %0, %7 : vector<1x64x128xi1>, vector<1x64x128xf32>
    %cst_2 = arith.constant 0xFF800000 : f32
    %9 = vector.broadcast %cst_2 : f32 to vector<1x64x128xf32>
    %10 = arith.select %6, %0, %9 : vector<1x64x128xi1>, vector<1x64x128xf32>
    %c0_i32 = arith.constant 0 : i32
    %11 = arith.cmpi eq, %arg1, %c0_i32 : i32
    %12 = arith.extui %11 : i1 to i32
    %c0_i32_3 = arith.constant 0 : i32
    %13 = arith.cmpi ne, %12, %c0_i32_3 : i32
    scf.if %13 {
      %c0_7 = arith.constant 0 : index
      %c0_8 = arith.constant 0 : index
      %c0_9 = arith.constant 0 : index
      %20 = vector.load %arg6[%c0_7, %c0_8, %c0_9] : memref<1x64x128xf32, #tpu.memory_space<vmem>>, vector<1x64x128xf32>
      tpu.vector_store %arg6[%c0_7, %c0_8, %c0_9], %8 {strides = array<i32>} : memref<1x64x128xf32, #tpu.memory_space<vmem>>, vector<1x64x128xf32>,
      %c0_10 = arith.constant 0 : index
      %c0_11 = arith.constant 0 : index
      %c0_12 = arith.constant 0 : index
      %21 = vector.load %arg7[%c0_10, %c0_11, %c0_12] : memref<1x64x128xf32, #tpu.memory_space<vmem>>, vector<1x64x128xf32>
      tpu.vector_store %arg7[%c0_10, %c0_11, %c0_12], %10 {strides = array<i32>} : memref<1x64x128xf32, #tpu.memory_space<vmem>>, vector<1x64x128xf32>,
    } else {
    }
    %c0_i32_4 = arith.constant 0 : i32
    %14 = arith.cmpi sgt, %arg1, %c0_i32_4 : i32
    %15 = arith.extui %14 : i1 to i32
    %c0_i32_5 = arith.constant 0 : i32
    %16 = arith.cmpi ne, %15, %c0_i32_5 : i32
    scf.if %16 {
      %c0_7 = arith.constant 0 : index
      %c0_8 = arith.constant 0 : index
      %c0_9 = arith.constant 0 : index
      %20 = vector.load %arg6[%c0_7, %c0_8, %c0_9] : memref<1x64x128xf32, #tpu.memory_space<vmem>>, vector<1x64x128xf32>
      %21 = arith.addf %20, %8 : vector<1x64x128xf32>
      %c0_10 = arith.constant 0 : index
      %c0_11 = arith.constant 0 : index
      %c0_12 = arith.constant 0 : index
      %22 = vector.load %arg6[%c0_10, %c0_11, %c0_12] : memref<1x64x128xf32, #tpu.memory_space<vmem>>, vector<1x64x128xf32>
      tpu.vector_store %arg6[%c0_10, %c0_11, %c0_12], %21 {strides = array<i32>} : memref<1x64x128xf32, #tpu.memory_space<vmem>>, vector<1x64x128xf32>,
      %c0_13 = arith.constant 0 : index
      %c0_14 = arith.constant 0 : index
      %c0_15 = arith.constant 0 : index
      %23 = vector.load %arg7[%c0_13, %c0_14, %c0_15] : memref<1x64x128xf32, #tpu.memory_space<vmem>>, vector<1x64x128xf32>
      %24 = arith.maximumf %23, %10 : vector<1x64x128xf32>
      %c0_16 = arith.constant 0 : index
      %c0_17 = arith.constant 0 : index
      %c0_18 = arith.constant 0 : index
      %25 = vector.load %arg7[%c0_16, %c0_17, %c0_18] : memref<1x64x128xf32, #tpu.memory_space<vmem>>, vector<1x64x128xf32>
      tpu.vector_store %arg7[%c0_16, %c0_17, %c0_18], %24 {strides = array<i32>} : memref<1x64x128xf32, #tpu.memory_space<vmem>>, vector<1x64x128xf32>,
    } else {
    }
    %c3_i32 = arith.constant 3 : i32
    %17 = arith.cmpi eq, %arg1, %c3_i32 : i32
    %18 = arith.extui %17 : i1 to i32
    %c0_i32_6 = arith.constant 0 : i32
    %19 = arith.cmpi ne, %18, %c0_i32_6 : i32
    scf.if %19 {
      %c0_7 = arith.constant 0 : index
      %c0_8 = arith.constant 0 : index
      %c0_9 = arith.constant 0 : index
      %20 = vector.load %arg6[%c0_7, %c0_8, %c0_9] : memref<1x64x128xf32, #tpu.memory_space<vmem>>, vector<1x64x128xf32>
      %cst_10 = arith.constant dense<0.000000e+00> : vector<1x64xf32>
      %21 = vector.multi_reduction <add>, %20, %cst_10 [2] : vector<1x64x128xf32> to vector<1x64xf32>
      %cst_11 = arith.constant 2.500000e-03 : f32
      %22 = vector.broadcast %cst_11 : f32 to vector<1x64xf32>
      %23 = arith.mulf %21, %22 : vector<1x64xf32>
      %c0_12 = arith.constant 0 : index
      %c0_13 = arith.constant 0 : index
      %c0_14 = arith.constant 0 : index
      %24 = vector.load %arg7[%c0_12, %c0_13, %c0_14] : memref<1x64x128xf32, #tpu.memory_space<vmem>>, vector<1x64x128xf32>
      %cst_15 = arith.constant dense<0xFF800000> : vector<1x64xf32>
      %25 = vector.multi_reduction <maximumf>, %24, %cst_15 [2] : vector<1x64x128xf32> to vector<1x64xf32>
      %c0_16 = arith.constant 0 : index
      %c0_17 = arith.constant 0 : index
      %26 = vector.load %arg3[%c0_16, %c0_17] : memref<64x4xf32, #tpu.memory_space<vmem>>, vector<64x4xf32>
      %c0_18 = arith.constant 0 : index
      %c0_19 = arith.constant 0 : index
      %27 = vector.load %arg4[%c0_18, %c0_19] : memref<4x64xf32, #tpu.memory_space<vmem>>, vector<4x64xf32>
      %cst_20 = arith.constant dense<0.000000e+00> : vector<1x4xf32>
      %28 = tpu.matmul %23, %26, %cst_20 {dimension_numbers = #tpu.dot_dimension_numbers<[1], [0], [0], [1], [0, 0, 1, 1], [], []>} : vector<1x64xf32>, vector<64x4xf32>, vector<1x4xf32> -> vector<1x4xf32>
      %cst_21 = arith.constant 0.000000e+00 : f32
      %29 = vector.broadcast %cst_21 : f32 to vector<1x4xf32>
      %30 = arith.maximumf %28, %29 : vector<1x4xf32>
      %cst_22 = arith.constant dense<0.000000e+00> : vector<1x64xf32>
      %31 = tpu.matmul %30, %27, %cst_22 {dimension_numbers = #tpu.dot_dimension_numbers<[1], [0], [0], [1], [0, 0, 1, 1], [], []>} : vector<1x4xf32>, vector<4x64xf32>, vector<1x64xf32> -> vector<1x64xf32>
      %cst_23 = arith.constant dense<0.000000e+00> : vector<1x4xf32>
      %32 = tpu.matmul %25, %26, %cst_23 {dimension_numbers = #tpu.dot_dimension_numbers<[1], [0], [0], [1], [0, 0, 1, 1], [], []>} : vector<1x64xf32>, vector<64x4xf32>, vector<1x4xf32> -> vector<1x4xf32>
      %cst_24 = arith.constant 0.000000e+00 : f32
      %33 = vector.broadcast %cst_24 : f32 to vector<1x4xf32>
      %34 = arith.maximumf %32, %33 : vector<1x4xf32>
      %cst_25 = arith.constant dense<0.000000e+00> : vector<1x64xf32>
      %35 = tpu.matmul %34, %27, %cst_25 {dimension_numbers = #tpu.dot_dimension_numbers<[1], [0], [0], [1], [0, 0, 1, 1], [], []>} : vector<1x4xf32>, vector<4x64xf32>, vector<1x64xf32> -> vector<1x64xf32>
      %36 = arith.addf %31, %35 : vector<1x64xf32>
      %cst_26 = arith.constant 0.000000e+00 : f32
      %37 = vector.broadcast %cst_26 : f32 to vector<1x64xf32>
      %38 = arith.cmpf oge, %36, %37 : vector<1x64xf32>
      %cst_27 = arith.constant 0.000000e+00 : f32
      %39 = vector.broadcast %cst_27 : f32 to vector<1x64xf32>
      %40 = arith.subf %39, %36 : vector<1x64xf32>
      %41 = arith.select %38, %40, %36 : vector<1x64xi1>, vector<1x64xf32>
      %42 = math.exp %41 : vector<1x64xf32>
      %cst_28 = arith.constant 1.000000e+00 : f32
      %43 = vector.broadcast %cst_28 : f32 to vector<1x64xf32>
      %44 = arith.addf %43, %42 : vector<1x64xf32>
      %cst_29 = arith.constant 1.000000e+00 : f32
      %45 = vector.broadcast %cst_29 : f32 to vector<1x64xf32>
      %46 = arith.divf %45, %44 : vector<1x64xf32>
      %cst_30 = arith.constant 1.000000e+00 : f32
      %47 = vector.broadcast %cst_30 : f32 to vector<1x64xf32>
      %48 = arith.addf %47, %42 : vector<1x64xf32>
      %49 = arith.divf %42, %48 : vector<1x64xf32>
      %50 = arith.select %38, %46, %49 : vector<1x64xi1>, vector<1x64xf32>
      %51 = vector.shape_cast %50 : vector<1x64xf32> to vector<1x1x64xf32>
      %c0_31 = arith.constant 0 : index
      %c0_32 = arith.constant 0 : index
      %c0_33 = arith.constant 0 : index
      %52 = vector.load %arg5[%c0_31, %c0_32, %c0_33] : memref<1x1x64xf32, #tpu.memory_space<vmem>>, vector<1x1x64xf32>
      tpu.vector_store %arg5[%c0_31, %c0_32, %c0_33], %51 {strides = array<i32>} : memref<1x1x64xf32, #tpu.memory_space<vmem>>, vector<1x1x64xf32>,
    } else {
    }
    return
  }
  func.func @transform_0(%arg0: i32, %arg1: i32) -> (i32, i32, i32) {
    %c0_i32 = arith.constant 0 : i32
    %c0_i32_0 = arith.constant 0 : i32
    return %arg0, %c0_i32, %arg1 : i32, i32, i32
  }
  func.func @transform_1(%arg0: i32, %arg1: i32) -> (i32, i32) {
    %c0_i32 = arith.constant 0 : i32
    %c0_i32_0 = arith.constant 0 : i32
    %c0_i32_1 = arith.constant 0 : i32
    return %c0_i32, %c0_i32_0 : i32, i32
  }
  func.func @transform_2(%arg0: i32, %arg1: i32) -> (i32, i32) {
    %c0_i32 = arith.constant 0 : i32
    %c0_i32_0 = arith.constant 0 : i32
    %c0_i32_1 = arith.constant 0 : i32
    return %c0_i32, %c0_i32_0 : i32, i32
  }
  func.func @transform_3(%arg0: i32, %arg1: i32) -> (i32, i32, i32) {
    %c0_i32 = arith.constant 0 : i32
    %c0_i32_0 = arith.constant 0 : i32
    %c0_i32_1 = arith.constant 0 : i32
    return %arg0, %c0_i32, %c0_i32_0 : i32, i32, i32
  }
}

</mosaic_0001>

<llo_original>
// kernel: tpu_custom_call.1
$region0: #{tpu_custom_call.1}
  #allocation0 [shape = 'u32[]', space=smem, size = 0x4, offset = 0x4, fixed_abs, tag = 'smem constant byte address 0x4 - core index']
  #allocation1 [shape = 'u32[144,128]{1,0:T(1,128)}', space=vmem, size = 0x12000, scoped, tag = 'internal scratch']
  #allocation2 [shape = 'f32[1,64,128]{2,1,0:T(8,128)}', space=vmem, size = 0x8000, scoped, tag = 'scratch operand']
  #allocation3 [shape = 'f32[1,64,128]{2,1,0:T(8,128)}', space=vmem, size = 0x8000, scoped, tag = 'scratch operand']
  %s0 = inlined_call_operand.hbm [shape: f32[2,64,400], index: 0, kind: input, shape index: {}]
  %s1 = inlined_call_operand.vmem [shape: f32[64,4], index: 1, kind: input, shape index: {}]
  %s2 = inlined_call_operand.vmem [shape: f32[4,64], index: 2, kind: input, shape index: {}]
  %s3 = inlined_call_operand.hbm [shape: f32[2,1,64], index: 3, kind: output, shape index: {}]
  %s4 = sld [smem:[#allocation0]]
  $region61: #{tpu_custom_call.1} parent=0
    _
  %s6 = ssub.s32 1, %s4
  %s7 = scalar_select 0, %s6, %s4
  $region1: #{tpu_custom_call.1} parent=0
    #allocation4 [shape = 'u8[65536]{0}', space=vmem, size = 0x10000, scoped, tag = 'input window, operand 0']
    #allocation5 [shape = 's32[2]{0}', space=sflag, size = 0x8, scoped, tag = 'scoped memory for tpu_custom_call.1']
    #allocation6 [shape = 's32[2]{0}', space=sflag, size = 0x8, scoped, tag = 'scoped memory for tpu_custom_call.1']
    #allocation7 [shape = 'u8[1024]{0}', space=vmem, size = 0x400, scoped, tag = 'output window, operand 0']
    %8 = vsyncpa [#allocation5], 0
    %s9 = scalar_lea.sflag [#allocation5], 1
    %10 = vsyncpa %s9, 0
    %11 = vsyncpa [#allocation6], 0
    %s12 = scalar_lea.sflag [#allocation6], 1
    %13 = vsyncpa %s12, 0
    loop: start=0, step=1, limit=10
    $region2: #{tpu_custom_call.1} parent=1 // loop_pre_header
      _
    $region3: #{tpu_custom_call.1} parent=1 // loop_header
      %s15 = sphi 0, %s19
      %p16 = scmp.ge.s32.totalorder %s15, 10
      %s22 = sphi 0, %s34
      %s23 = sphi 0, %s30
      %s24 = sphi 0, %s22
      %s25 = sphi 0, %s23
      %s26 = sphi 0, %s24
      %s27 = sphi 0, %s25
      %s39 = sphi 0, %s41
      %s42 = sphi 0, %s39
      %s43 = sphi 0, %s42
      %s59 = sphi 0, %s43
      %s63 = sphi 0, %s63
      %s65 = sphi 0, %s63
      %s66 = sphi 0, %s65
      %s80 = sphi 0, %s66
      %s84 = sphi 0, %s84
      %s86 = sphi 0, %s84
      %s87 = sphi 0, %s86
      %s101 = sphi 0, %s87
      %s107 = sphi 0, %s109
      %s110 = sphi 0, %s107
      %s111 = sphi 0, %s110
      %s127 = sphi 0, %s111
    $region4: #{tpu_custom_call.1} parent=1 // loop_header_branch
      %18 = sbr.rel (%p16) target = $region8
    $region5: #{tpu_custom_call.1} parent=1 // loop_body
      %s20 = ssub.s32 %s15, 1
      %s21 = ssub.s32 %s15, 2
      %s28 = sadd.s32 1, %s23
      %p29 = scmp.ge.s32.totalorder %s28, 4
      %s30 = scalar_select %p29, 0, %s28
      %s31 = sadd.s32 1, %s22
      %s32 = scalar_select %p29, %s31, %s22
      %p33 = scmp.ge.s32.totalorder %s32, 2
      %s34 = scalar_select %p33, 0, %s32
      %s35 = ssub.s32 %s22, %s34
      %s36 = ssub.s32 %s23, %s30
      %s37 = sor.u32 %s35, %s36
      %p38 = scmp.eq.s32.totalorder %s37, 0
      %s40 = sadd.s32 %s39, 1
      %s41 = scalar_select %p38, %s39, %s40
      %p44 = pneg %p38
      %p45 = scmp.eq.s32.totalorder %s15, 7
      %p46 = por %p44, %p45
      %p47 = scmp.ne.s32.totalorder %s39, %s42
      %p48 = scmp.eq.s32.totalorder %s15, 0
      %p49 = por %p47, %p48
      %p50 = scmp.ne.s32.totalorder %s39, %s42
      %p51 = scmp.eq.s32.totalorder %s20, 7
      %p52 = por %p50, %p51
      %p53 = scmp.ne.s32.totalorder %s42, %s43
      %p54 = scmp.eq.s32.totalorder %s20, 0
      %p55 = por %p53, %p54
      %p56 = scmp.ne.s32.totalorder %s42, %s43
      %p57 = scmp.eq.s32.totalorder %s21, 7
      %p58 = por %p56, %p57
      %p60 = scmp.ne.s32.totalorder %s43, %s59
      %p61 = scmp.eq.s32.totalorder %s21, 0
      %p62 = por %p60, %p61
      %s64 = sadd.s32 %s63, 1
      %p67 = scmp.eq.s32.totalorder %s15, 7
      %p68 = scmp.ne.s32.totalorder %s63, %s65
      %p69 = scmp.eq.s32.totalorder %s15, 0
      %p70 = por %p68, %p69
      %p71 = scmp.ne.s32.totalorder %s63, %s65
      %p72 = scmp.eq.s32.totalorder %s20, 7
      %p73 = por %p71, %p72
      %p74 = scmp.ne.s32.totalorder %s65, %s66
      %p75 = scmp.eq.s32.totalorder %s20, 0
      %p76 = por %p74, %p75
      %p77 = scmp.ne.s32.totalorder %s65, %s66
      %p78 = scmp.eq.s32.totalorder %s21, 7
      %p79 = por %p77, %p78
      %p81 = scmp.ne.s32.totalorder %s66, %s80
      %p82 = scmp.eq.s32.totalorder %s21, 0
      %p83 = por %p81, %p82
      %s85 = sadd.s32 %s84, 1
      %p88 = scmp.eq.s32.totalorder %s15, 7
      %p89 = scmp.ne.s32.totalorder %s84, %s86
      %p90 = scmp.eq.s32.totalorder %s15, 0
      %p91 = por %p89, %p90
      %p92 = scmp.ne.s32.totalorder %s84, %s86
      %p93 = scmp.eq.s32.totalorder %s20, 7
      %p94 = por %p92, %p93
      %p95 = scmp.ne.s32.totalorder %s86, %s87
      %p96 = scmp.eq.s32.totalorder %s20, 0
      %p97 = por %p95, %p96
      %p98 = scmp.ne.s32.totalorder %s86, %s87
      %p99 = scmp.eq.s32.totalorder %s21, 7
      %p100 = por %p98, %p99
      %p102 = scmp.ne.s32.totalorder %s87, %s101
      %p103 = scmp.eq.s32.totalorder %s21, 0
      %p104 = por %p102, %p103
      %s105 = ssub.s32 %s22, %s34
      %p106 = scmp.eq.s32.totalorder %s105, 0
      %s108 = sadd.s32 %s107, 1
      %s109 = scalar_select %p106, %s107, %s108
      %p112 = pneg %p106
      %p113 = scmp.eq.s32.totalorder %s15, 7
      %p114 = por %p112, %p113
      %p115 = scmp.ne.s32.totalorder %s107, %s110
      %p116 = scmp.eq.s32.totalorder %s15, 0
      %p117 = por %p115, %p116
      %p118 = scmp.ne.s32.totalorder %s107, %s110
      %p119 = scmp.eq.s32.totalorder %s20, 7
      %p120 = por %p118, %p119
      %p121 = scmp.ne.s32.totalorder %s110, %s111
      %p122 = scmp.eq.s32.totalorder %s20, 0
      %p123 = por %p121, %p122
      %p124 = scmp.ne.s32.totalorder %s110, %s111
      %p125 = scmp.eq.s32.totalorder %s21, 7
      %p126 = por %p124, %p125
      %p128 = scmp.ne.s32.totalorder %s111, %s127
      %p129 = scmp.eq.s32.totalorder %s21, 0
      %p130 = por %p128, %p129
      %p131 = scmp.le.s32.totalorder 1, %s15
      %p132 = scmp.lt.s32.totalorder %s15, 9
      %p133 = pnand %p131, %p132
      %p134 = pneg %p133
      // Predicated region
      $region9: #{tpu_custom_call.1} parent=5 // pred_check
        _
      $region10: #{tpu_custom_call.1} parent=5 // pred_check_branch
        %136 = sbr.rel (%p133) target = $region12
      $region11: #{tpu_custom_call.1} parent=5 // pred_region
        %s137 = ssub.s32 %s15, 1
        // Predicated region
        $region13: #{tpu_custom_call.1} parent=11 // pred_check
          %p138 = pneg %p76
        $region14: #{tpu_custom_call.1} parent=11 // pred_check_branch
          %140 = sbr.rel (%p138) target = $region16
        $region15: #{tpu_custom_call.1} parent=11 // pred_region
          _
        $region16: #{tpu_custom_call.1} parent=11 // pred_fallthru
          _
        // Predicated region
        $region17: #{tpu_custom_call.1} parent=11 // pred_check
          %p141 = pneg %p97
        $region18: #{tpu_custom_call.1} parent=11 // pred_check_branch
          %143 = sbr.rel (%p141) target = $region20
        $region19: #{tpu_custom_call.1} parent=11 // pred_region
          _
        $region20: #{tpu_custom_call.1} parent=11 // pred_fallthru
          _
      $region12: #{tpu_custom_call.1} parent=5 // pred_fallthru
        _
      %p144 = scmp.lt.s32.totalorder %s15, 8
      // Predicated region
      $region21: #{tpu_custom_call.1} parent=5 // pred_check
        %p145 = pneg %p144
      $region22: #{tpu_custom_call.1} parent=5 // pred_check_branch
        %147 = sbr.rel (%p145) target = $region24
      $region23: #{tpu_custom_call.1} parent=5 // pred_region
        // Predicated region
        $region25: #{tpu_custom_call.1} parent=23 // pred_check
          %p148 = pneg %p49
        $region26: #{tpu_custom_call.1} parent=23 // pred_check_branch
          %150 = sbr.rel (%p148) target = $region28
        $region27: #{tpu_custom_call.1} parent=23 // pred_region
          %s151 = sand.u32 %s39, 1
          %s152 = scalar_lea.sflag [#allocation5], %s151
          %s153 = sand.u32 %s39, 1
          %s154 = smul.addr %s153, 64
          %s155 = scalar_lea.vmem [#allocation4], %s154
          %s157 = ssub.s32 1024, 1024
          %158 = vsyncadd %s152, %s157
          %s159 = smul.addr %s22, 32
          %s160 = sadd.s32 %s23, %s159
          %s161 = smul.addr %s160, 128
          %s162 = scalar_lea.hbm %s0, %s161
          %s163 = sshll.u32 %s155, 4
          %s164 = int_to_ptr.vmem [resolvable:$true] %s163
          %169 = dma.hbm_to_vmem [thread:$0]  %s162, 1024, %s164, %s152, 512, 128, 8
        $region28: #{tpu_custom_call.1} parent=23 // pred_fallthru
          _
      $region24: #{tpu_custom_call.1} parent=5 // pred_fallthru
        _
      %p170 = scmp.le.s32.totalorder 1, %s15
      %p171 = scmp.lt.s32.totalorder %s15, 9
      %p172 = pnand %p170, %p171
      %p173 = pneg %p172
      // Predicated region
      $region29: #{tpu_custom_call.1} parent=5 // pred_check
        _
      $region30: #{tpu_custom_call.1} parent=5 // pred_check_branch
        %175 = sbr.rel (%p172) target = $region32
      $region31: #{tpu_custom_call.1} parent=5 // pred_region
        %s176 = ssub.s32 %s15, 1
        %s177 = sand.u32 %s42, 1
        %s178 = scalar_lea.sflag [#allocation5], %s177
        %s179 = sand.u32 %s42, 1
        %s180 = smul.addr %s179, 64
        %s181 = scalar_lea.vmem [#allocation4], %s180
        // Predicated region
        $region33: #{tpu_custom_call.1} parent=31 // pred_check
          %p182 = pneg %p55
        $region34: #{tpu_custom_call.1} parent=31 // pred_check_branch
          %184 = sbr.rel (%p182) target = $region36
        $region35: #{tpu_custom_call.1} parent=31 // pred_region
          %185 = dma.done %s178, 1024
        $region36: #{tpu_custom_call.1} parent=31 // pred_fallthru
          _
        %s186 = sand.u32 %s42, 1
        %s187 = scalar_lea.sflag [#allocation5], %s186
        %s188 = sand.u32 %s42, 1
        %s189 = smul.addr %s188, 64
        %s190 = scalar_lea.vmem [#allocation4], %s189
        %p191 = pneg %p55
        %p192 = pneg %p52
        %p193 = pneg %p76
        %p194 = pneg %p73
        %p195 = pneg %p97
        %p196 = pneg %p94
        %p197 = pneg %p123
        %p198 = pneg %p120
        %s199 = sand.u32 %s110, 1
        %s200 = scalar_lea.sflag [#allocation6], %s199
        %s201 = sand.u32 %s110, 1
        %s202 = scalar_lea.vmem [#allocation7], %s201
        %v203 = vld [vmem:[%s181] sm:$0xff]
        %v204 = vld [vmem:[%s181 + $0x8] sm:$0xff]
        %v205 = vld [vmem:[%s181 + $0x10] sm:$0xff]
        %v206 = vld [vmem:[%s181 + $0x18] sm:$0xff]
        %v207 = vld [vmem:[%s181 + $0x20] sm:$0xff]
        %v208 = vld [vmem:[%s181 + $0x28] sm:$0xff]
        %v209 = vld [vmem:[%s181 + $0x30] sm:$0xff]
        %v210 = vld [vmem:[%s181 + $0x38] sm:$0xff]
        %v211 = vlaneseq
        %v212 = vand.u32 %v211, 127
        %s213 = smul.u32 %s25, 128
        %v214 = vstv %s213
        %v215 = vadd.s32 %v214, %v212
        %vm216 = vcmp.lt.s32.totalorder %v215, 400
        %v217 = vsel %vm216, %v203, 0.0
        %v218 = vsel %vm216, %v204, 0.0
        %v219 = vsel %vm216, %v205, 0.0
        %v220 = vsel %vm216, %v206, 0.0
        %v221 = vsel %vm216, %v207, 0.0
        %v222 = vsel %vm216, %v208, 0.0
        %v223 = vsel %vm216, %v209, 0.0
        %v224 = vsel %vm216, %v210, 0.0
        %v225 = vsel %vm216, %v203, -inf
        %v226 = vsel %vm216, %v204, -inf
        %v227 = vsel %vm216, %v205, -inf
        %v228 = vsel %vm216, %v206, -inf
        %v229 = vsel %vm216, %v207, -inf
        %v230 = vsel %vm216, %v208, -inf
        %v231 = vsel %vm216, %v209, -inf
        %v232 = vsel %vm216, %v210, -inf
        %p233 = scmp.eq.s32.totalorder %s25, 0
        // Predicated region
        $region37: #{tpu_custom_call.1} parent=31 // pred_check
          %p234 = pneg %p233
        $region38: #{tpu_custom_call.1} parent=31 // pred_check_branch
          %236 = sbr.rel (%p234) target = $region40
        $region39: #{tpu_custom_call.1} parent=31 // pred_region
          %237 = vst [vmem:[#allocation2] sm:$0xff] %v217
          %238 = vst [vmem:[#allocation2 + $0x8] sm:$0xff] %v218
          %239 = vst [vmem:[#allocation2 + $0x10] sm:$0xff] %v219
          %240 = vst [vmem:[#allocation2 + $0x18] sm:$0xff] %v220
          %241 = vst [vmem:[#allocation2 + $0x20] sm:$0xff] %v221
          %242 = vst [vmem:[#allocation2 + $0x28] sm:$0xff] %v222
          %243 = vst [vmem:[#allocation2 + $0x30] sm:$0xff] %v223
          %244 = vst [vmem:[#allocation2 + $0x38] sm:$0xff] %v224
          %245 = vst [vmem:[#allocation3] sm:$0xff] %v225
          %246 = vst [vmem:[#allocation3 + $0x8] sm:$0xff] %v226
          %247 = vst [vmem:[#allocation3 + $0x10] sm:$0xff] %v227
          %248 = vst [vmem:[#allocation3 + $0x18] sm:$0xff] %v228
          %249 = vst [vmem:[#allocation3 + $0x20] sm:$0xff] %v229
          %250 = vst [vmem:[#allocation3 + $0x28] sm:$0xff] %v230
          %251 = vst [vmem:[#allocation3 + $0x30] sm:$0xff] %v231
          %252 = vst [vmem:[#allocation3 + $0x38] sm:$0xff] %v232
        $region40: #{tpu_custom_call.1} parent=31 // pred_fallthru
          _
        %p253 = scmp.gt.s32.totalorder %s25, 0
        // Predicated region
        $region41: #{tpu_custom_call.1} parent=31 // pred_check
          %p254 = pneg %p253
        $region42: #{tpu_custom_call.1} parent=31 // pred_check_branch
          %256 = sbr.rel (%p254) target = $region44
        $region43: #{tpu_custom_call.1} parent=31 // pred_region
          %v257 = vld [vmem:[#allocation2] sm:$0xff]
          %v258 = vld [vmem:[#allocation2 + $0x8] sm:$0xff]
          %v259 = vld [vmem:[#allocation2 + $0x10] sm:$0xff]
          %v260 = vld [vmem:[#allocation2 + $0x18] sm:$0xff]
          %v261 = vld [vmem:[#allocation2 + $0x20] sm:$0xff]
          %v262 = vld [vmem:[#allocation2 + $0x28] sm:$0xff]
          %v263 = vld [vmem:[#allocation2 + $0x30] sm:$0xff]
          %v264 = vld [vmem:[#allocation2 + $0x38] sm:$0xff]
          %v265 = vadd.f32 %v257, %v217
          %v266 = vadd.f32 %v258, %v218
          %v267 = vadd.f32 %v259, %v219
          %v268 = vadd.f32 %v260, %v220
          %v269 = vadd.f32 %v261, %v221
          %v270 = vadd.f32 %v262, %v222
          %v271 = vadd.f32 %v263, %v223
          %v272 = vadd.f32 %v264, %v224
          %273 = vst [vmem:[#allocation2] sm:$0xff] %v265
          %274 = vst [vmem:[#allocation2 + $0x8] sm:$0xff] %v266
          %275 = vst [vmem:[#allocation2 + $0x10] sm:$0xff] %v267
          %276 = vst [vmem:[#allocation2 + $0x18] sm:$0xff] %v268
          %277 = vst [vmem:[#allocation2 + $0x20] sm:$0xff] %v269
          %278 = vst [vmem:[#allocation2 + $0x28] sm:$0xff] %v270
          %279 = vst [vmem:[#allocation2 + $0x30] sm:$0xff] %v271
          %280 = vst [vmem:[#allocation2 + $0x38] sm:$0xff] %v272
          %v281 = vld [vmem:[#allocation3] sm:$0xff]
          %v282 = vld [vmem:[#allocation3 + $0x8] sm:$0xff]
          %v283 = vld [vmem:[#allocation3 + $0x10] sm:$0xff]
          %v284 = vld [vmem:[#allocation3 + $0x18] sm:$0xff]
          %v285 = vld [vmem:[#allocation3 + $0x20] sm:$0xff]
          %v286 = vld [vmem:[#allocation3 + $0x28] sm:$0xff]
          %v287 = vld [vmem:[#allocation3 + $0x30] sm:$0xff]
          %v288 = vld [vmem:[#allocation3 + $0x38] sm:$0xff]
          %v289 = vmax.f32 %v281, %v225
          %v290 = vmax.f32 %v282, %v226
          %v291 = vmax.f32 %v283, %v227
          %v292 = vmax.f32 %v284, %v228
          %v293 = vmax.f32 %v285, %v229
          %v294 = vmax.f32 %v286, %v230
          %v295 = vmax.f32 %v287, %v231
          %v296 = vmax.f32 %v288, %v232
          %297 = vst [vmem:[#allocation3] sm:$0xff] %v289
          %298 = vst [vmem:[#allocation3 + $0x8] sm:$0xff] %v290
          %299 = vst [vmem:[#allocation3 + $0x10] sm:$0xff] %v291
          %300 = vst [vmem:[#allocation3 + $0x18] sm:$0xff] %v292
          %301 = vst [vmem:[#allocation3 + $0x20] sm:$0xff] %v293
          %302 = vst [vmem:[#allocation3 + $0x28] sm:$0xff] %v294
          %303 = vst [vmem:[#allocation3 + $0x30] sm:$0xff] %v295
          %304 = vst [vmem:[#allocation3 + $0x38] sm:$0xff] %v296
        $region44: #{tpu_custom_call.1} parent=31 // pred_fallthru
          _
        %p305 = scmp.eq.s32.totalorder %s25, 3
        // Predicated region
        $region45: #{tpu_custom_call.1} parent=31 // pred_check
          %p306 = pneg %p305
        $region46: #{tpu_custom_call.1} parent=31 // pred_check_branch
          %308 = sbr.rel (%p306) target = $region48
        $region47: #{tpu_custom_call.1} parent=31 // pred_region
          %v309 = vld [vmem:[#allocation2] sm:$0xff]
          %v310 = vld [vmem:[#allocation2 + $0x8] sm:$0xff]
          %v311 = vld [vmem:[#allocation2 + $0x10] sm:$0xff]
          %v312 = vld [vmem:[#allocation2 + $0x18] sm:$0xff]
          %v313 = vld [vmem:[#allocation2 + $0x20] sm:$0xff]
          %v314 = vld [vmem:[#allocation2 + $0x28] sm:$0xff]
          %v315 = vld [vmem:[#allocation2 + $0x30] sm:$0xff]
          %v316 = vld [vmem:[#allocation2 + $0x38] sm:$0xff]
          %317 = vadd.xlane.f32.xlu0 %v309
          %v318 = vpop.xlane.xlu0 %317
          %319 = vadd.xlane.f32.xlu0 %v310
          %v320 = vpop.xlane.xlu0 %319
          %321 = vadd.xlane.f32.xlu0 %v311
          %v322 = vpop.xlane.xlu0 %321
          %323 = vadd.xlane.f32.xlu0 %v312
          %v324 = vpop.xlane.xlu0 %323
          %325 = vadd.xlane.f32.xlu0 %v313
          %v326 = vpop.xlane.xlu0 %325
          %327 = vadd.xlane.f32.xlu0 %v314
          %v328 = vpop.xlane.xlu0 %327
          %329 = vadd.xlane.f32.xlu0 %v315
          %v330 = vpop.xlane.xlu0 %329
          %331 = vadd.xlane.f32.xlu0 %v316
          %v332 = vpop.xlane.xlu0 %331
          %v333 = vmul.f32 %v318, 0.0025
          %v334 = vmul.f32 %v320, 0.0025
          %v335 = vmul.f32 %v322, 0.0025
          %v336 = vmul.f32 %v324, 0.0025
          %v337 = vmul.f32 %v326, 0.0025
          %v338 = vmul.f32 %v328, 0.0025
          %v339 = vmul.f32 %v330, 0.0025
          %v340 = vmul.f32 %v332, 0.0025
          %v341 = vld [vmem:[#allocation3] sm:$0xff]
          %v342 = vld [vmem:[#allocation3 + $0x8] sm:$0xff]
          %v343 = vld [vmem:[#allocation3 + $0x10] sm:$0xff]
          %v344 = vld [vmem:[#allocation3 + $0x18] sm:$0xff]
          %v345 = vld [vmem:[#allocation3 + $0x20] sm:$0xff]
          %v346 = vld [vmem:[#allocation3 + $0x28] sm:$0xff]
          %v347 = vld [vmem:[#allocation3 + $0x30] sm:$0xff]
          %v348 = vld [vmem:[#allocation3 + $0x38] sm:$0xff]
          %349 = vmax.xlane.f32.xlu0 %v341
          %v350 = vpop.xlane.xlu0 %349
          %351 = vmax.xlane.f32.xlu0 %v342
          %v352 = vpop.xlane.xlu0 %351
          %353 = vmax.xlane.f32.xlu0 %v343
          %v354 = vpop.xlane.xlu0 %353
          %355 = vmax.xlane.f32.xlu0 %v344
          %v356 = vpop.xlane.xlu0 %355
          %357 = vmax.xlane.f32.xlu0 %v345
          %v358 = vpop.xlane.xlu0 %357
          %359 = vmax.xlane.f32.xlu0 %v346
          %v360 = vpop.xlane.xlu0 %359
          %361 = vmax.xlane.f32.xlu0 %v347
          %v362 = vpop.xlane.xlu0 %361
          %363 = vmax.xlane.f32.xlu0 %v348
          %v364 = vpop.xlane.xlu0 %363
          %v365 = vld [vmem:[%s1] sm:$0xff]
          %v366 = vld [vmem:[%s1 + $0x8] sm:$0xff]
          %v367 = vld [vmem:[%s1 + $0x10] sm:$0xff]
          %v368 = vld [vmem:[%s1 + $0x18] sm:$0xff]
          %v369 = vld [vmem:[%s1 + $0x20] sm:$0xff]
          %v370 = vld [vmem:[%s1 + $0x28] sm:$0xff]
          %v371 = vld [vmem:[%s1 + $0x30] sm:$0xff]
          %v372 = vld [vmem:[%s1 + $0x38] sm:$0xff]
          %v373 = vld [vmem:[%s2] sm:$0xf]
          %v382 = vlaneseq
          %v383 = vshrl.u32 %v382, 7
          %v384 = vsub.s32 %v212, %v383
          %v385 = vrot.slane %v333, %v384
          %v386 = vadd.s32 %v212, 4294967288
          %v387 = vlaneseq
          %v388 = vshrl.u32 %v387, 7
          %v389 = vsub.s32 %v386, %v388
          %v390 = vrot.slane %v334, %v389
          %vm391 = vcmask 130112
          %v392 = vsel %vm391, %v390, %v385
          %v393 = vadd.s32 %v212, 4294967280
          %v394 = vlaneseq
          %v395 = vshrl.u32 %v394, 7
          %v396 = vsub.s32 %v393, %v395
          %v397 = vrot.slane %v335, %v396
          %vm398 = vcmask 195712
          %v399 = vsel %vm398, %v397, %v392
          %v400 = vadd.s32 %v212, 4294967272
          %v401 = vlaneseq
          %v402 = vshrl.u32 %v401, 7
          %v403 = vsub.s32 %v400, %v402
          %v404 = vrot.slane %v336, %v403
          %vm405 = vcmask 261312
          %v406 = vsel %vm405, %v404, %v399
          %v407 = vadd.s32 %v212, 4294967264
          %v408 = vlaneseq
          %v409 = vshrl.u32 %v408, 7
          %v410 = vsub.s32 %v407, %v409
          %v411 = vrot.slane %v337, %v410
          %vm412 = vcmask 326912
          %v413 = vsel %vm412, %v411, %v406
          %v414 = vadd.s32 %v212, 4294967256
          %v415 = vlaneseq
          %v416 = vshrl.u32 %v415, 7
          %v417 = vsub.s32 %v414, %v416
          %v418 = vrot.slane %v338, %v417
          %vm419 = vcmask 392512
          %v420 = vsel %vm419, %v418, %v413
          %v421 = vadd.s32 %v212, 4294967248
          %v422 = vlaneseq
          %v423 = vshrl.u32 %v422, 7
          %v424 = vsub.s32 %v421, %v423
          %v425 = vrot.slane %v339, %v424
          %vm426 = vcmask 458112
          %v427 = vsel %vm426, %v425, %v420
          %v428 = vadd.s32 %v212, 4294967240
          %v429 = vlaneseq
          %v430 = vshrl.u32 %v429, 7
          %v431 = vsub.s32 %v428, %v430
          %v432 = vrot.slane %v340, %v431
          %vm433 = vcmask 523712
          %v434 = vsel %vm433, %v432, %v427
          %vm435 = vcmask 523264
          %v436 = vsel %vm435, %v434, 0
          %438 = vmatprep.subr.mxu0 0.0
          %439 = vmatpush1.msra.mxu0 %v365
          %440 = vmatprep.subr.mxu0 0.0
          %441 = vmatpush1.msra.mxu0 %v366
          %442 = vmatprep.subr.mxu0 0.0
          %443 = vmatpush1.msra.mxu0 %v367
          %444 = vmatprep.subr.mxu0 0.0
          %445 = vmatpush1.msra.mxu0 %v368
          %446 = vmatprep.subr.mxu0 0.0
          %447 = vmatpush1.msra.mxu0 %v369
          %448 = vmatprep.subr.mxu0 0.0
          %449 = vmatpush1.msra.mxu0 %v370
          %450 = vmatprep.subr.mxu0 0.0
          %451 = vmatpush1.msra.mxu0 %v371
          %452 = vmatprep.subr.mxu0 0.0
          %453 = vmatpush1.msra.mxu0 %v372
          %454 = vmatprep.subr.mxu0 0.0
          %455 = vmatpush1.msra.mxu0 0.0
          %456 = vmatprep.subr.mxu0 0.0
          %457 = vmatpush1.msra.mxu0 0.0
          %458 = vmatprep.subr.mxu0 0.0
          %459 = vmatpush1.msra.mxu0 0.0
          %460 = vmatprep.subr.mxu0 0.0
          %461 = vmatpush1.msra.mxu0 0.0
          %462 = vmatprep.subr.mxu0 0.0
          %463 = vmatpush1.msra.mxu0 0.0
          %464 = vmatprep.subr.mxu0 0.0
          %465 = vmatpush1.msra.mxu0 0.0
          %466 = vmatprep.subr.mxu0 0.0
          %467 = vmatpush1.msra.mxu0 0.0
          %468 = vmatprep.subr.mxu0 0.0
          %469 = vmatpush1.msra.mxu0 0.0
          %470 = vmatprep.subr.mxu0 0.0
          %471 = vmatpush1.msra.mxu0 0.0
          %472 = vmatprep.subr.mxu0 0.0
          %473 = vmatpush1.msra.mxu0 0.0
          %474 = vmatprep.subr.mxu0 0.0
          %475 = vmatpush1.msra.mxu0 0.0
          %476 = vmatprep.subr.mxu0 0.0
          %477 = vmatpush1.msra.mxu0 0.0
          %478 = vmatprep.subr.mxu0 0.0
          %479 = vmatpush1.msra.mxu0 0.0
          %480 = vmatprep.subr.mxu0 0.0
          %481 = vmatpush1.msra.mxu0 0.0
          %482 = vmatprep.subr.mxu0 0.0
          %483 = vmatpush1.msra.mxu0 0.0
          %484 = vmatprep.subr.mxu0 0.0
          %485 = vmatpush1.msra.mxu0 0.0
          %486 = vmatprep.subr.mxu0 0.0
          %487 = vmatpush1.msra.mxu0 0.0
          %488 = vmatprep.subr.mxu0 0.0
          %489 = vmatpush1.msra.mxu0 0.0
          %490 = vmatprep.subr.mxu0 0.0
          %491 = vmatpush1.msra.mxu0 0.0
          %492 = vmatprep.subr.mxu0 0.0
          %493 = vmatpush1.msra.mxu0 0.0
          %494 = vmatprep.subr.mxu0 0.0
          %495 = vmatpush1.msra.mxu0 0.0
          %496 = vmatprep.subr.mxu0 0.0
          %497 = vmatpush1.msra.mxu0 0.0
          %498 = vmatprep.subr.mxu0 0.0
          %499 = vmatpush1.msra.mxu0 0.0
          %500 = vmatprep.subr.mxu0 0.0
          %501 = vmatpush1.msra.mxu0 0.0
          %502 = vmatprep.mubr.f32.mxu0 0.0
          %503 = vmatmul.mubr.f32.gmra.mrb[0].mxu0 %v436
          %v504 = vpop.f32.mrb[0].mxu0
          %v505 = vadd.f32 0.0, %v504
          %v506 = vpop.f32.mrb[0].mxu0
          %507 = vdwg.mxu0
          %v508 = vmax.f32 %v505, 0.0
          %v517 = vlaneseq
          %v518 = vshrl.u32 %v517, 7
          %v519 = vsub.s32 %v212, %v518
          %v520 = vrot.slane %v350, %v519
          %v521 = vlaneseq
          %v522 = vshrl.u32 %v521, 7
          %v523 = vsub.s32 %v386, %v522
          %v524 = vrot.slane %v352, %v523
          %v525 = vsel %vm391, %v524, %v520
          %v526 = vlaneseq
          %v527 = vshrl.u32 %v526, 7
          %v528 = vsub.s32 %v393, %v527
          %v529 = vrot.slane %v354, %v528
          %v530 = vsel %vm398, %v529, %v525
          %v531 = vlaneseq
          %v532 = vshrl.u32 %v531, 7
          %v533 = vsub.s32 %v400, %v532
          %v534 = vrot.slane %v356, %v533
          %v535 = vsel %vm405, %v534, %v530
          %v536 = vlaneseq
          %v537 = vshrl.u32 %v536, 7
          %v538 = vsub.s32 %v407, %v537
          %v539 = vrot.slane %v358, %v538
          %v540 = vsel %vm412, %v539, %v535
          %v541 = vlaneseq
          %v542 = vshrl.u32 %v541, 7
          %v543 = vsub.s32 %v414, %v542
          %v544 = vrot.slane %v360, %v543
          %v545 = vsel %vm419, %v544, %v540
          %v546 = vlaneseq
          %v547 = vshrl.u32 %v546, 7
          %v548 = vsub.s32 %v421, %v547
          %v549 = vrot.slane %v362, %v548
          %v550 = vsel %vm426, %v549, %v545
          %v551 = vlaneseq
          %v552 = vshrl.u32 %v551, 7
          %v553 = vsub.s32 %v428, %v552
          %v554 = vrot.slane %v364, %v553
          %v555 = vsel %vm433, %v554, %v550
          %v556 = vsel %vm435, %v555, 0
          %558 = vmatprep.subr.mxu0 0.0
          %559 = vmatpush1.msra.mxu0 %v365
          %560 = vmatprep.subr.mxu0 0.0
          %561 = vmatpush1.msra.mxu0 %v366
          %562 = vmatprep.subr.mxu0 0.0
          %563 = vmatpush1.msra.mxu0 %v367
          %564 = vmatprep.subr.mxu0 0.0
          %565 = vmatpush1.msra.mxu0 %v368
          %566 = vmatprep.subr.mxu0 0.0
          %567 = vmatpush1.msra.mxu0 %v369
          %568 = vmatprep.subr.mxu0 0.0
          %569 = vmatpush1.msra.mxu0 %v370
          %570 = vmatprep.subr.mxu0 0.0
          %571 = vmatpush1.msra.mxu0 %v371
          %572 = vmatprep.subr.mxu0 0.0
          %573 = vmatpush1.msra.mxu0 %v372
          %574 = vmatprep.subr.mxu0 0.0
          %575 = vmatpush1.msra.mxu0 0.0
          %576 = vmatprep.subr.mxu0 0.0
          %577 = vmatpush1.msra.mxu0 0.0
          %578 = vmatprep.subr.mxu0 0.0
          %579 = vmatpush1.msra.mxu0 0.0
          %580 = vmatprep.subr.mxu0 0.0
          %581 = vmatpush1.msra.mxu0 0.0
          %582 = vmatprep.subr.mxu0 0.0
          %583 = vmatpush1.msra.mxu0 0.0
          %584 = vmatprep.subr.mxu0 0.0
          %585 = vmatpush1.msra.mxu0 0.0
          %586 = vmatprep.subr.mxu0 0.0
          %587 = vmatpush1.msra.mxu0 0.0
          %588 = vmatprep.subr.mxu0 0.0
          %589 = vmatpush1.msra.mxu0 0.0
          %590 = vmatprep.subr.mxu0 0.0
          %591 = vmatpush1.msra.mxu0 0.0
          %592 = vmatprep.subr.mxu0 0.0
          %593 = vmatpush1.msra.mxu0 0.0
          %594 = vmatprep.subr.mxu0 0.0
          %595 = vmatpush1.msra.mxu0 0.0
          %596 = vmatprep.subr.mxu0 0.0
          %597 = vmatpush1.msra.mxu0 0.0
          %598 = vmatprep.subr.mxu0 0.0
          %599 = vmatpush1.msra.mxu0 0.0
          %600 = vmatprep.subr.mxu0 0.0
          %601 = vmatpush1.msra.mxu0 0.0
          %602 = vmatprep.subr.mxu0 0.0
          %603 = vmatpush1.msra.mxu0 0.0
          %604 = vmatprep.subr.mxu0 0.0
          %605 = vmatpush1.msra.mxu0 0.0
          %606 = vmatprep.subr.mxu0 0.0
          %607 = vmatpush1.msra.mxu0 0.0
          %608 = vmatprep.subr.mxu0 0.0
          %609 = vmatpush1.msra.mxu0 0.0
          %610 = vmatprep.subr.mxu0 0.0
          %611 = vmatpush1.msra.mxu0 0.0
          %612 = vmatprep.subr.mxu0 0.0
          %613 = vmatpush1.msra.mxu0 0.0
          %614 = vmatprep.subr.mxu0 0.0
          %615 = vmatpush1.msra.mxu0 0.0
          %616 = vmatprep.subr.mxu0 0.0
          %617 = vmatpush1.msra.mxu0 0.0
          %618 = vmatprep.subr.mxu0 0.0
          %619 = vmatpush1.msra.mxu0 0.0
          %620 = vmatprep.subr.mxu0 0.0
          %621 = vmatpush1.msra.mxu0 0.0
          %622 = vmatprep.mubr.f32.mxu0 0.0
          %623 = vmatmul.mubr.f32.gmra.mrb[0].mxu0 %v556
          %v624 = vpop.f32.mrb[0].mxu0
          %v625 = vadd.f32 0.0, %v624
          %v626 = vpop.f32.mrb[0].mxu0
          %627 = vdwg.mxu0
          %v628 = vmax.f32 %v625, 0.0
          %vm629 = vcmask 31744
          %v631 = vsel %vm629, %v628, 0
          %vm633 = vcmask 1043456
          %v635 = vsel %vm633, %v373, 0
          %637 = vmatprep.subr.mxu0 0.0
          %638 = vmatpush1.msra.mxu0 %v635
          %639 = vmatprep.subr.mxu0 0.0
          %640 = vmatpush1.msra.mxu0 0.0
          %641 = vmatprep.subr.mxu0 0.0
          %642 = vmatpush1.msra.mxu0 0.0
          %643 = vmatprep.subr.mxu0 0.0
          %644 = vmatpush1.msra.mxu0 0.0
          %645 = vmatprep.subr.mxu0 0.0
          %646 = vmatpush1.msra.mxu0 0.0
          %647 = vmatprep.subr.mxu0 0.0
          %648 = vmatpush1.msra.mxu0 0.0
          %649 = vmatprep.subr.mxu0 0.0
          %650 = vmatpush1.msra.mxu0 0.0
          %651 = vmatprep.subr.mxu0 0.0
          %652 = vmatpush1.msra.mxu0 0.0
          %653 = vmatprep.subr.mxu0 0.0
          %654 = vmatpush1.msra.mxu0 0.0
          %655 = vmatprep.subr.mxu0 0.0
          %656 = vmatpush1.msra.mxu0 0.0
          %657 = vmatprep.subr.mxu0 0.0
          %658 = vmatpush1.msra.mxu0 0.0
          %659 = vmatprep.subr.mxu0 0.0
          %660 = vmatpush1.msra.mxu0 0.0
          %661 = vmatprep.subr.mxu0 0.0
          %662 = vmatpush1.msra.mxu0 0.0
          %663 = vmatprep.subr.mxu0 0.0
          %664 = vmatpush1.msra.mxu0 0.0
          %665 = vmatprep.subr.mxu0 0.0
          %666 = vmatpush1.msra.mxu0 0.0
          %667 = vmatprep.subr.mxu0 0.0
          %668 = vmatpush1.msra.mxu0 0.0
          %669 = vmatprep.subr.mxu0 0.0
          %670 = vmatpush1.msra.mxu0 0.0
          %671 = vmatprep.subr.mxu0 0.0
          %672 = vmatpush1.msra.mxu0 0.0
          %673 = vmatprep.subr.mxu0 0.0
          %674 = vmatpush1.msra.mxu0 0.0
          %675 = vmatprep.subr.mxu0 0.0
          %676 = vmatpush1.msra.mxu0 0.0
          %677 = vmatprep.subr.mxu0 0.0
          %678 = vmatpush1.msra.mxu0 0.0
          %679 = vmatprep.subr.mxu0 0.0
          %680 = vmatpush1.msra.mxu0 0.0
          %681 = vmatprep.subr.mxu0 0.0
          %682 = vmatpush1.msra.mxu0 0.0
          %683 = vmatprep.subr.mxu0 0.0
          %684 = vmatpush1.msra.mxu0 0.0
          %685 = vmatprep.subr.mxu0 0.0
          %686 = vmatpush1.msra.mxu0 0.0
          %687 = vmatprep.subr.mxu0 0.0
          %688 = vmatpush1.msra.mxu0 0.0
          %689 = vmatprep.subr.mxu0 0.0
          %690 = vmatpush1.msra.mxu0 0.0
          %691 = vmatprep.subr.mxu0 0.0
          %692 = vmatpush1.msra.mxu0 0.0
          %693 = vmatprep.subr.mxu0 0.0
          %694 = vmatpush1.msra.mxu0 0.0
          %695 = vmatprep.subr.mxu0 0.0
          %696 = vmatpush1.msra.mxu0 0.0
          %697 = vmatprep.subr.mxu0 0.0
          %698 = vmatpush1.msra.mxu0 0.0
          %699 = vmatprep.subr.mxu0 0.0
          %700 = vmatpush1.msra.mxu0 0.0
          %701 = vmatprep.mubr.f32.mxu0 0.0
          %702 = vmatmul.mubr.f32.gmra.mrb[0].mxu0 %v631
          %v703 = vpop.f32.mrb[0].mxu0
          %v704 = vadd.f32 0.0, %v703
          %v705 = vpop.f32.mrb[0].mxu0
          %706 = vdwg.mxu0
          %v708 = vsel %vm629, %v508, 0
          %710 = vmatprep.subr.mxu0 0.0
          %711 = vmatpush1.msra.mxu0 %v635
          %712 = vmatprep.subr.mxu0 0.0
          %713 = vmatpush1.msra.mxu0 0.0
          %714 = vmatprep.subr.mxu0 0.0
          %715 = vmatpush1.msra.mxu0 0.0
          %716 = vmatprep.subr.mxu0 0.0
          %717 = vmatpush1.msra.mxu0 0.0
          %718 = vmatprep.subr.mxu0 0.0
          %719 = vmatpush1.msra.mxu0 0.0
          %720 = vmatprep.subr.mxu0 0.0
          %721 = vmatpush1.msra.mxu0 0.0
          %722 = vmatprep.subr.mxu0 0.0
          %723 = vmatpush1.msra.mxu0 0.0
          %724 = vmatprep.subr.mxu0 0.0
          %725 = vmatpush1.msra.mxu0 0.0
          %726 = vmatprep.subr.mxu0 0.0
          %727 = vmatpush1.msra.mxu0 0.0
          %728 = vmatprep.subr.mxu0 0.0
          %729 = vmatpush1.msra.mxu0 0.0
          %730 = vmatprep.subr.mxu0 0.0
          %731 = vmatpush1.msra.mxu0 0.0
          %732 = vmatprep.subr.mxu0 0.0
          %733 = vmatpush1.msra.mxu0 0.0
          %734 = vmatprep.subr.mxu0 0.0
          %735 = vmatpush1.msra.mxu0 0.0
          %736 = vmatprep.subr.mxu0 0.0
          %737 = vmatpush1.msra.mxu0 0.0
          %738 = vmatprep.subr.mxu0 0.0
          %739 = vmatpush1.msra.mxu0 0.0
          %740 = vmatprep.subr.mxu0 0.0
          %741 = vmatpush1.msra.mxu0 0.0
          %742 = vmatprep.subr.mxu0 0.0
          %743 = vmatpush1.msra.mxu0 0.0
          %744 = vmatprep.subr.mxu0 0.0
          %745 = vmatpush1.msra.mxu0 0.0
          %746 = vmatprep.subr.mxu0 0.0
          %747 = vmatpush1.msra.mxu0 0.0
          %748 = vmatprep.subr.mxu0 0.0
          %749 = vmatpush1.msra.mxu0 0.0
          %750 = vmatprep.subr.mxu0 0.0
          %751 = vmatpush1.msra.mxu0 0.0
          %752 = vmatprep.subr.mxu0 0.0
          %753 = vmatpush1.msra.mxu0 0.0
          %754 = vmatprep.subr.mxu0 0.0
          %755 = vmatpush1.msra.mxu0 0.0
          %756 = vmatprep.subr.mxu0 0.0
          %757 = vmatpush1.msra.mxu0 0.0
          %758 = vmatprep.subr.mxu0 0.0
          %759 = vmatpush1.msra.mxu0 0.0
          %760 = vmatprep.subr.mxu0 0.0
          %761 = vmatpush1.msra.mxu0 0.0
          %762 = vmatprep.subr.mxu0 0.0
          %763 = vmatpush1.msra.mxu0 0.0
          %764 = vmatprep.subr.mxu0 0.0
          %765 = vmatpush1.msra.mxu0 0.0
          %766 = vmatprep.subr.mxu0 0.0
          %767 = vmatpush1.msra.mxu0 0.0
          %768 = vmatprep.subr.mxu0 0.0
          %769 = vmatpush1.msra.mxu0 0.0
          %770 = vmatprep.subr.mxu0 0.0
          %771 = vmatpush1.msra.mxu0 0.0
          %772 = vmatprep.subr.mxu0 0.0
          %773 = vmatpush1.msra.mxu0 0.0
          %774 = vmatprep.mubr.f32.mxu0 0.0
          %775 = vmatmul.mubr.f32.gmra.mrb[0].mxu0 %v708
          %v776 = vpop.f32.mrb[0].mxu0
          %v777 = vadd.f32 %v704, %v776
          %v778 = vpop.f32.mrb[0].mxu0
          %779 = vdwg.mxu0
          %vm780 = vcmp.ge.f32.partialorder %v777, 0.0
          %v781 = vsub.f32 0.0, %v777
          %v782 = vsel %vm780, %v781, %v777
          %v783 = vmul.f32 %v782, 1.442695
          %v784 = vpow.pop %v783
          %v785 = vadd.f32 %v784, 1.0
          %v786 = vrcp.pop %v785
          %v787 = vmul.f32 1.0, %v786
          %v788 = vmul.f32 %v784, %v786
          %v789 = vsel %vm780, %v787, %v788
          %vm790 = vcmask 516096
          %791 = vst.msk [vmem:[%s202] sm:$0x1] %vm790, %v789
        $region48: #{tpu_custom_call.1} parent=31 // pred_fallthru
          _
        %s792 = sand.u32 %s110, 1
        %s793 = scalar_lea.sflag [#allocation6], %s792
        %s794 = sand.u32 %s110, 1
        %s795 = scalar_lea.vmem [#allocation7], %s794
        // Predicated region
        $region49: #{tpu_custom_call.1} parent=31 // pred_check
          %p796 = pneg %p120
        $region50: #{tpu_custom_call.1} parent=31 // pred_check_branch
          %798 = sbr.rel (%p796) target = $region52
        $region51: #{tpu_custom_call.1} parent=31 // pred_region
          %s800 = ssub.s32 16, 16
          %801 = vsyncadd %s793, %s800
          %s802 = smul.addr %s24, 16
          %s803 = scalar_lea.hbm %s3, %s802
          %s805 = sshll.u32 %s795, 4
          %s806 = int_to_ptr.vmem [resolvable:$true] %s805
          %808 = dma.vmem_to_hbm [thread:$0]  %s806, 16, %s803, %s793
        $region52: #{tpu_custom_call.1} parent=31 // pred_fallthru
          _
      $region32: #{tpu_custom_call.1} parent=5 // pred_fallthru
        _
      %p809 = scmp.le.s32.totalorder 2, %s15
      // Predicated region
      $region53: #{tpu_custom_call.1} parent=5 // pred_check
        %p810 = pneg %p809
      $region54: #{tpu_custom_call.1} parent=5 // pred_check_branch
        %812 = sbr.rel (%p810) target = $region56
      $region55: #{tpu_custom_call.1} parent=5 // pred_region
        %s813 = ssub.s32 %s15, 2
        // Predicated region
        $region57: #{tpu_custom_call.1} parent=55 // pred_check
          %p814 = pneg %p126
        $region58: #{tpu_custom_call.1} parent=55 // pred_check_branch
          %816 = sbr.rel (%p814) target = $region60
        $region59: #{tpu_custom_call.1} parent=55 // pred_region
          %s817 = sand.u32 %s111, 1
          %s818 = scalar_lea.sflag [#allocation6], %s817
          %s819 = sand.u32 %s111, 1
          %s820 = scalar_lea.vmem [#allocation7], %s819
          %821 = dma.done %s818, 16
        $region60: #{tpu_custom_call.1} parent=55 // pred_fallthru
          _
      $region56: #{tpu_custom_call.1} parent=5 // pred_fallthru
        _
    $region6: #{tpu_custom_call.1} parent=1 // loop_footer
      %s19 = sadd.s32 1, %s15
    $region7: #{tpu_custom_call.1} parent=1 // loop_footer_branch
      %14 = sbr.rel target = $region3
    $region8: #{tpu_custom_call.1} parent=1 // loop_exit
      _
    %822 = vsyncpa [#allocation5], 1
    %s823 = scalar_lea.sflag [#allocation5], 1
    %824 = vsyncpa %s823, 1
    %825 = vsyncpa [#allocation6], 1
    %s826 = scalar_lea.sflag [#allocation6], 1
    %827 = vsyncpa %s826, 1

</llo_original>
